<compile_context>
chip_gen: v7x
topology: tpu7x:2x2x1
jax: 0.10.0
libtpu: 0.0.40
codegen_flags: <defaults>
</compile_context>

<pallas_src>
import functools
import math

import jax
import jax.numpy as jnp
from jax.experimental import pallas as pl
from jax.experimental.pallas import tpu as pltpu


# ----------------------------- helpers -----------------------------

def _pick_row_tile(n):
    """Largest preferred row tile that divides n exactly (no host-side padding / slicing)."""
    for cand in (512, 256, 128, 64, 32, 16, 8):
        if n % cand == 0:
            return cand
    return n  # fallback: one full block (block dims == array dims is always legal)


def _probe_copy_kernel(w_ref, o_ref):
    o_ref[...] = w_ref[...]


@functools.lru_cache(maxsize=None)
def _single_buffer_supported():
    """Probe whether this Pallas build accepts pipeline_mode=pl.Buffered(buffer_count=1)."""
    try:
        spec = pl.BlockSpec((8, 128), lambda i: (0, 0),
                            pipeline_mode=pl.Buffered(buffer_count=1))
        jax.block_until_ready(pl.pallas_call(
            _probe_copy_kernel,
            grid=(1,),
            in_specs=[spec],
            out_specs=pl.BlockSpec((8, 128), lambda i: (0, 0)),
            out_shape=jax.ShapeDtypeStruct((8, 128), jnp.float32),
        )(jnp.zeros((8, 128), jnp.float32)))
        return True
    except Exception:
        return False


def _const_spec(shape):
    """BlockSpec for weights that never change across grid steps: constant index_map and,
    when supported, single-buffered (no wasted second pipeline buffer -> v7x VMEM headroom)."""
    idx = lambda *_: (0,) * len(shape)
    if _single_buffer_supported():
        return pl.BlockSpec(shape, idx, pipeline_mode=pl.Buffered(buffer_count=1))
    return pl.BlockSpec(shape, idx)


# ----------------------------- kernels -----------------------------

def _attn_kernel(src_ref, pos_ref, wqk_ref, bqk_ref, wv_ref, bv_ref, wo_ref, bo_ref,
                 o_ref, acc_ref, *, scale, dh_p):
    """Per-(batch, head) fused QKV projection + attention + out_proj contribution.

    grid = (B, H); h is the innermost reduction axis: per-head out_proj contributions
    accumulate into a lane-dense (S, D) f32 VMEM scratch; the bf16 output block is written
    once, at the last head.
    """
    h = pl.program_id(1)

    @pl.when(h == 0)
    def _():
        acc_ref[...] = jnp.zeros_like(acc_ref)

    src = src_ref[0]                                        # (S, D) f32
    x = (src + pos_ref[0]).astype(jnp.bfloat16)             # q = k = src + pos

    # Fused per-head Q|K projection: one (D, 2*dh_p) MXU pass (256-wide output for dh<=128).
    qk = jnp.dot(x, wqk_ref[0], preferred_element_type=jnp.float32) + bqk_ref[0]
    v = (jnp.dot(src.astype(jnp.bfloat16), wv_ref[0],
                 preferred_element_type=jnp.float32) + bv_ref[0]).astype(jnp.bfloat16)
    q = qk[:, :dh_p].astype(jnp.bfloat16)                   # 128-aligned lane slice
    k = qk[:, dh_p:].astype(jnp.bfloat16)

    # Scores / softmax in f32 (v5e has no bf16 VPU/EUP path); no materialized transpose.
    s = jax.lax.dot_general(q, k, (((1,), (1,)), ((), ())),
                            preferred_element_type=jnp.float32) * scale
    m = jnp.max(s, axis=-1, keepdims=True)
    p = jnp.exp(s - m)
    p = p * pl.reciprocal(jnp.sum(p, axis=-1, keepdims=True), approx=True)

    attn = jnp.dot(p.astype(jnp.bfloat16), v, preferred_element_type=jnp.float32)
    # Per-head slice of out_proj -> lane-dense (S, D) contribution, accumulated over heads.
    acc_ref[...] += jnp.dot(attn.astype(jnp.bfloat16), wo_ref[0],
                            preferred_element_type=jnp.float32)

    @pl.when(h == pl.num_programs(1) - 1)
    def _():
        o_ref[0] = (acc_ref[...] + bo_ref[...]).astype(o_ref.dtype)


def _post_kernel(src_ref, src2_ref, g1_ref, be1_ref, w1_ref, b1_ref,
                 w2_ref, b2_ref, g2_ref, be2_ref, out_ref, *, eps):
    """Row-tiled: residual + norm1 + FFN (linear1 -> ReLU -> linear2) + residual + norm2."""
    # residual + norm1 (dropout1 == identity); LayerNorm statistics kept in f32.
    x = src_ref[...] + src2_ref[...].astype(jnp.float32)
    mu = jnp.mean(x, axis=-1, keepdims=True)
    var = jnp.mean((x - mu) ** 2, axis=-1, keepdims=True)
    x = (x - mu) * jax.lax.rsqrt(var + eps) * g1_ref[...] + be1_ref[...]
    # FFN; bf16 MXU operands, f32 accumulation (dropout == identity).
    hid = jnp.dot(x.astype(jnp.bfloat16), w1_ref[...],
                  preferred_element_type=jnp.float32) + b1_ref[...]
    hid = jnp.maximum(hid, 0.0)
    ff = jnp.dot(hid.astype(jnp.bfloat16), w2_ref[...],
                 preferred_element_type=jnp.float32) + b2_ref[...]
    # residual + norm2 (dropout2 == identity).
    y = x + ff
    mu = jnp.mean(y, axis=-1, keepdims=True)
    var = jnp.mean((y - mu) ** 2, axis=-1, keepdims=True)
    out_ref[...] = ((y - mu) * jax.lax.rsqrt(var + eps) * g2_ref[...]
                    + be2_ref[...]).astype(out_ref.dtype)


# ----------------------------- wrapper -----------------------------

def transformer_encoder_layer(src, pos, params, nhead, dim_feedforward):
    S, B, D = src.shape
    H = nhead
    dh = D // H
    dh_p = ((dh + 127) // 128) * 128          # pad head dim to a lane-dense multiple of 128
    F = dim_feedforward
    N = B * S
    f32, bf16 = jnp.float32, jnp.bfloat16

    # Glue: (S,B,D) -> (B,S,D) so per-batch attention blocks and flattened row tiles are
    # both contiguous / lane-dense.  The later (B,S,D)->(N,D) reshapes are free (no copies).
    src_b = jnp.transpose(src, (1, 0, 2)).astype(f32)
    pos_b = jnp.transpose(pos, (1, 0, 2)).astype(f32)

    def row(v, dt=f32):
        return v.reshape(1, -1).astype(dt)

    # nn.Linear stores (out, in); pre-transpose so kernels do plain x @ W.
    wq = params["in_proj_w"][0 * D:1 * D].T           # (D_in, D_out)
    wk = params["in_proj_w"][1 * D:2 * D].T
    wv = params["in_proj_w"][2 * D:3 * D].T
    bq = params["in_proj_b"][0 * D:1 * D]
    bk = params["in_proj_b"][1 * D:2 * D]
    bv = params["in_proj_b"][2 * D:3 * D]

    # Head-major weight layout, zero-padded to dh_p: per-head blocks arrive via BlockSpec DMA
    # so the attention kernel never lane-sub-slices a projection. Zero padding keeps the math
    # exact (padded Q/K/V columns are 0; padded W_o rows are 0).
    pad_last = ((0, 0), (0, 0), (0, dh_p - dh))

    def head_major(w, b):                             # -> (H, D, dh_p) bf16, (H, 1, dh_p) f32
        w = jnp.pad(w.reshape(D, H, dh).transpose(1, 0, 2), pad_last)
        b = jnp.pad(b.reshape(H, 1, dh), pad_last)
        return w.astype(bf16), b.astype(f32)

    wq_h, bq_h = head_major(wq, bq)
    wk_h, bk_h = head_major(wk, bk)
    wv_h, bv_h = head_major(wv, bv)
    wqk_h = jnp.concatenate([wq_h, wk_h], axis=-1)    # (H, D, 2*dh_p): fused Q|K weights
    bqk_h = jnp.concatenate([bq_h, bk_h], axis=-1)    # (H, 1, 2*dh_p)

    # out_proj applied per head: wo_h[h] is the (dh_p, D) row slice; contributions sum over h.
    wo_h = jnp.pad(params["out_proj_w"].T.reshape(H, dh, D),
                   ((0, 0), (0, dh_p - dh), (0, 0))).astype(bf16)
    bo = row(params["out_proj_b"])
    w1 = params["linear1_w"].T.astype(bf16)
    b1 = row(params["linear1_b"])
    w2 = params["linear2_w"].T.astype(bf16)
    b2 = row(params["linear2_b"])
    g1, be1 = row(params["norm1_g"]), row(params["norm1_b"])
    g2, be2 = row(params["norm2_g"]), row(params["norm2_b"])

    cp_attn = pltpu.CompilerParams(
        dimension_semantics=("parallel", "arbitrary"),
        vmem_limit_bytes=32 * 1024 * 1024)
    cp_rows = pltpu.CompilerParams(
        dimension_semantics=("parallel",),
        vmem_limit_bytes=32 * 1024 * 1024)

    # --- kernel 1: fused per-(batch, head) QKV + attention + out_proj, bf16 writeback ---
    src2 = pl.pallas_call(
        functools.partial(_attn_kernel, scale=1.0 / math.sqrt(dh), dh_p=dh_p),
        grid=(B, H),
        in_specs=[
            pl.BlockSpec((1, S, D), lambda b, h: (b, 0, 0)),            # src
            pl.BlockSpec((1, S, D), lambda b, h: (b, 0, 0)),            # pos
            pl.BlockSpec((1, D, 2 * dh_p), lambda b, h: (h, 0, 0)),     # W_q|W_k (head h)
            pl.BlockSpec((1, 1, 2 * dh_p), lambda b, h: (h, 0, 0)),     # b_q|b_k
            pl.BlockSpec((1, D, dh_p), lambda b, h: (h, 0, 0)),         # W_v
            pl.BlockSpec((1, 1, dh_p), lambda b, h: (h, 0, 0)),         # b_v
            pl.BlockSpec((1, dh_p, D), lambda b, h: (h, 0, 0)),         # W_o (head slice)
            _const_spec((1, D)),                                        # b_o (VMEM-resident)
        ],
        out_specs=pl.BlockSpec((1, S, D), lambda b, h: (b, 0, 0)),
        out_shape=jax.ShapeDtypeStruct((B, S, D), bf16),
        scratch_shapes=[pltpu.VMEM((S, D), jnp.float32)],
        compiler_params=cp_attn,
        cost_estimate=pl.CostEstimate(
            flops=B * H * (6 * S * D * dh_p + 4 * S * S * dh_p + 2 * S * dh_p * D),
            transcendentals=B * H * S * S,
            bytes_accessed=int(2 * B * S * D * 4 + B * S * D * 2 + 8 * H * D * dh_p)),
    )(src_b, pos_b, wqk_h, bqk_h, wv_h, bv_h, wo_h, bo)

    # Free reshapes (batch-major, contiguous): no host-side pad/slice glue.
    src2d = src_b.reshape(N, D)
    src2_2d = src2.reshape(N, D)

    # --- kernel 2: residual + norm1 + FFN + residual + norm2, row-tiled over N ---
    TM = _pick_row_tile(N)
    out2d = pl.pallas_call(
        functools.partial(_post_kernel, eps=1e-5),
        grid=(N // TM,),
        in_specs=[pl.BlockSpec((TM, D), lambda i: (i, 0)),      # src (f32)
                  pl.BlockSpec((TM, D), lambda i: (i, 0)),      # src2 (bf16)
                  _const_spec((1, D)), _const_spec((1, D)),     # norm1 gamma / beta
                  _const_spec((D, F)), _const_spec((1, F)),     # linear1 W / b
                  _const_spec((F, D)), _const_spec((1, D)),     # linear2 W / b
                  _const_spec((1, D)), _const_spec((1, D))],    # norm2 gamma / beta
        out_specs=pl.BlockSpec((TM, D), lambda i: (i, 0)),
        out_shape=jax.ShapeDtypeStruct((N, D), f32),
        compiler_params=cp_rows,
        cost_estimate=pl.CostEstimate(
            flops=4 * N * D * F,
            transcendentals=2 * N,
            bytes_accessed=int(N * D * 4 + N * D * 2 + N * D * 4 + 4 * D * F)),
    )(src2d, src2_2d, g1, be1, w1, b1, w2, b2, g2, be2)

    return jnp.transpose(out2d.reshape(B, S, D), (1, 0, 2))     # back to (S, B, D)


# ----------------------------- params -----------------------------

def init_params(key, d_model, dim_feedforward):
    ks = jax.random.split(key, 8)
    s = 0.05
    f32 = jnp.float32
    return {
        "in_proj_w": jax.random.normal(ks[0], (3 * d_model, d_model), f32) * s,
        "in_proj_b": jax.random.normal(ks[1], (3 * d_model,), f32) * s,
        "out_proj_w": jax.random.normal(ks[2], (d_model, d_model), f32) * s,
        "out_proj_b": jnp.zeros((d_model,), f32),
        "linear1_w": jax.random.normal(ks[3], (dim_feedforward, d_model), f32) * s,
        "linear1_b": jax.random.normal(ks[4], (dim_feedforward,), f32) * s,
        "linear2_w": jax.random.normal(ks[5], (d_model, dim_feedforward), f32) * s,
        "linear2_b": jax.random.normal(ks[6], (d_model,), f32) * s,
        "norm1_g": jnp.ones((d_model,), f32),
        "norm1_b": jnp.zeros((d_model,), f32),
        "norm2_g": jnp.ones((d_model,), f32),
        "norm2_b": jnp.zeros((d_model,), f32),
    }


if __name__ == "__main__":
    S, B, D, H, F = 8, 2, 32, 4, 64   # seq, batch, d_model, nhead, dim_feedforward

    key = jax.random.PRNGKey(0)
    kp, ksrc, kpos = jax.random.split(key, 3)
    params = init_params(kp, D, F)
    src = jax.random.normal(ksrc, (S, B, D), jnp.float32)
    pos = jax.random.normal(kpos, (S, B, D), jnp.float32)

    out = transformer_encoder_layer(src, pos, params, nhead=H, dim_feedforward=F)
    out = jax.block_until_ready(out)
    assert out.shape == (S, B, D) and out.dtype == jnp.float32
    assert bool(jnp.all(jnp.isfinite(out)))
    print("KERNEL_OK")
</pallas_src>

<mosaic_0001>
module attributes {stable_mosaic.version = 11 : i64} {
  func.func @_probe_copy_kernel(%arg0: i32, %arg1: memref<8x128xf32, #tpu.memory_space<vmem>>, %arg2: memref<8x128xf32, #tpu.memory_space<vmem>>) attributes {dimension_semantics = [#tpu.dimension_semantics<arbitrary>], iteration_bounds = array<i64: 1>, scalar_prefetch = 0 : i64, scratch_operands = 0 : i64, tpu.core_type = #tpu.core_type<tc>, window_params = [{pipeline_mode = #tpu.pipeline_mode<synchronous>, transform_indices = @transform_0, window_bounds = array<i64: 8, 128>}, {pipeline_mode = #tpu.pipeline_mode<synchronous>, transform_indices = @transform_1, window_bounds = array<i64: 8, 128>}]} {
    %c0 = arith.constant 0 : index
    %c0_0 = arith.constant 0 : index
    %0 = vector.load %arg1[%c0, %c0_0] : memref<8x128xf32, #tpu.memory_space<vmem>>, vector<8x128xf32>
    %c0_1 = arith.constant 0 : index
    %c0_2 = arith.constant 0 : index
    %1 = vector.load %arg2[%c0_1, %c0_2] : memref<8x128xf32, #tpu.memory_space<vmem>>, vector<8x128xf32>
    tpu.vector_store %arg2[%c0_1, %c0_2], %0 {strides = array<i32>} : memref<8x128xf32, #tpu.memory_space<vmem>>, vector<8x128xf32>,
    return
  }
  func.func @transform_0(%arg0: i32) -> (i32, i32) {
    %c0_i32 = arith.constant 0 : i32
    %c0_i32_0 = arith.constant 0 : i32
    %c0_i32_1 = arith.constant 0 : i32
    return %c0_i32, %c0_i32_0 : i32, i32
  }
  func.func @transform_1(%arg0: i32) -> (i32, i32) {
    %c0_i32 = arith.constant 0 : i32
    %c0_i32_0 = arith.constant 0 : i32
    %c0_i32_1 = arith.constant 0 : i32
    return %c0_i32, %c0_i32_0 : i32, i32
  }
}

module attributes {stable_mosaic.version = 11 : i64} {
  func.func @_attn_kernel(%arg0: i32, %arg1: i32, %arg2: memref<1x8x32xf32, #tpu.memory_space<vmem>>, %arg3: memref<1x8x32xf32, #tpu.memory_space<vmem>>, %arg4: memref<1x32x256xbf16, #tpu.memory_space<vmem>>, %arg5: memref<1x1x256xf32, #tpu.memory_space<vmem>>, %arg6: memref<1x32x128xbf16, #tpu.memory_space<vmem>>, %arg7: memref<1x1x128xf32, #tpu.memory_space<vmem>>, %arg8: memref<1x128x32xbf16, #tpu.memory_space<vmem>>, %arg9: memref<1x32xf32, #tpu.memory_space<vmem>>, %arg10: memref<1x8x32xbf16, #tpu.memory_space<vmem>>, %arg11: memref<8x32xf32, #tpu.memory_space<vmem>>) attributes {dimension_semantics = [#tpu.dimension_semantics<parallel>, #tpu.dimension_semantics<arbitrary>], iteration_bounds = array<i64: 2, 4>, scalar_prefetch = 0 : i64, scratch_operands = 1 : i64, tpu.core_type = #tpu.core_type<tc>, window_params = [{transform_indices = @transform_0, window_bounds = array<i64: 1, 8, 32>}, {transform_indices = @transform_1, window_bounds = array<i64: 1, 8, 32>}, {transform_indices = @transform_2, window_bounds = array<i64: 1, 32, 256>}, {transform_indices = @transform_3, window_bounds = array<i64: 1, 1, 256>}, {transform_indices = @transform_4, window_bounds = array<i64: 1, 32, 128>}, {transform_indices = @transform_5, window_bounds = array<i64: 1, 1, 128>}, {transform_indices = @transform_6, window_bounds = array<i64: 1, 128, 32>}, {pipeline_mode = #tpu.pipeline_mode<synchronous>, transform_indices = @transform_7, window_bounds = array<i64: 1, 32>}, {transform_indices = @transform_8, window_bounds = array<i64: 1, 8, 32>}]} {
    %c0_i32 = arith.constant 0 : i32
    %0 = arith.cmpi eq, %arg1, %c0_i32 : i32
    %1 = arith.extui %0 : i1 to i32
    %c0_i32_0 = arith.constant 0 : i32
    %2 = arith.cmpi ne, %1, %c0_i32_0 : i32
    scf.if %2 {
      %cst_33 = arith.constant 0.000000e+00 : f32
      %54 = vector.broadcast %cst_33 : f32 to vector<8x32xf32>
      %c0_34 = arith.constant 0 : index
      %c0_35 = arith.constant 0 : index
      %55 = vector.load %arg11[%c0_34, %c0_35] : memref<8x32xf32, #tpu.memory_space<vmem>>, vector<8x32xf32>
      tpu.vector_store %arg11[%c0_34, %c0_35], %54 {strides = array<i32>} : memref<8x32xf32, #tpu.memory_space<vmem>>, vector<8x32xf32>,
    } else {
    }
    %c0 = arith.constant 0 : index
    %c0_1 = arith.constant 0 : index
    %c0_2 = arith.constant 0 : index
    %3 = vector.load %arg2[%c0, %c0_1, %c0_2] : memref<1x8x32xf32, #tpu.memory_space<vmem>>, vector<1x8x32xf32>
    %4 = vector.shape_cast %3 : vector<1x8x32xf32> to vector<8x32xf32>
    %c0_3 = arith.constant 0 : index
    %c0_4 = arith.constant 0 : index
    %c0_5 = arith.constant 0 : index
    %5 = vector.load %arg3[%c0_3, %c0_4, %c0_5] : memref<1x8x32xf32, #tpu.memory_space<vmem>>, vector<1x8x32xf32>
    %6 = vector.shape_cast %5 : vector<1x8x32xf32> to vector<8x32xf32>
    %7 = arith.addf %4, %6 : vector<8x32xf32>
    %8 = arith.truncf %7 : vector<8x32xf32> to vector<8x32xbf16>
    %c0_6 = arith.constant 0 : index
    %c0_7 = arith.constant 0 : index
    %c0_8 = arith.constant 0 : index
    %9 = vector.load %arg4[%c0_6, %c0_7, %c0_8] : memref<1x32x256xbf16, #tpu.memory_space<vmem>>, vector<1x32x256xbf16>
    %10 = vector.shape_cast %9 : vector<1x32x256xbf16> to vector<32x256xbf16>
    %cst = arith.constant dense<0.000000e+00> : vector<8x256xf32>
    %11 = tpu.matmul %8, %10, %cst {dimension_numbers = #tpu.dot_dimension_numbers<[1], [0], [0], [1], [0, 0, 1, 1], [], []>} : vector<8x32xbf16>, vector<32x256xbf16>, vector<8x256xf32> -> vector<8x256xf32>
    %c0_9 = arith.constant 0 : index
    %c0_10 = arith.constant 0 : index
    %c0_11 = arith.constant 0 : index
    %12 = vector.load %arg5[%c0_9, %c0_10, %c0_11] : memref<1x1x256xf32, #tpu.memory_space<vmem>>, vector<1x1x256xf32>
    %13 = vector.shape_cast %12 : vector<1x1x256xf32> to vector<1x256xf32>
    %14 = vector.broadcast %13 : vector<1x256xf32> to vector<8x256xf32>
    %15 = arith.addf %11, %14 : vector<8x256xf32>
    %16 = arith.truncf %4 : vector<8x32xf32> to vector<8x32xbf16>
    %c0_12 = arith.constant 0 : index
    %c0_13 = arith.constant 0 : index
    %c0_14 = arith.constant 0 : index
    %17 = vector.load %arg6[%c0_12, %c0_13, %c0_14] : memref<1x32x128xbf16, #tpu.memory_space<vmem>>, vector<1x32x128xbf16>
    %18 = vector.shape_cast %17 : vector<1x32x128xbf16> to vector<32x128xbf16>
    %cst_15 = arith.constant dense<0.000000e+00> : vector<8x128xf32>
    %19 = tpu.matmul %16, %18, %cst_15 {dimension_numbers = #tpu.dot_dimension_numbers<[1], [0], [0], [1], [0, 0, 1, 1], [], []>} : vector<8x32xbf16>, vector<32x128xbf16>, vector<8x128xf32> -> vector<8x128xf32>
    %c0_16 = arith.constant 0 : index
    %c0_17 = arith.constant 0 : index
    %c0_18 = arith.constant 0 : index
    %20 = vector.load %arg7[%c0_16, %c0_17, %c0_18] : memref<1x1x128xf32, #tpu.memory_space<vmem>>, vector<1x1x128xf32>
    %21 = vector.shape_cast %20 : vector<1x1x128xf32> to vector<1x128xf32>
    %22 = vector.broadcast %21 : vector<1x128xf32> to vector<8x128xf32>
    %23 = arith.addf %19, %22 : vector<8x128xf32>
    %24 = arith.truncf %23 : vector<8x128xf32> to vector<8x128xbf16>
    %25 = vector.extract_strided_slice %15 {offsets = [0, 0], sizes = [8, 128], strides = [1, 1]} : vector<8x256xf32> to vector<8x128xf32>
    %26 = arith.truncf %25 : vector<8x128xf32> to vector<8x128xbf16>
    %27 = vector.extract_strided_slice %15 {offsets = [0, 128], sizes = [8, 128], strides = [1, 1]} : vector<8x256xf32> to vector<8x128xf32>
    %28 = arith.truncf %27 : vector<8x128xf32> to vector<8x128xbf16>
    %cst_19 = arith.constant dense<0.000000e+00> : vector<8x8xf32>
    %29 = tpu.matmul %26, %28, %cst_19 {dimension_numbers = #tpu.dot_dimension_numbers<[1], [1], [0], [0], [0, 0, 1, 0], [], []>} : vector<8x128xbf16>, vector<8x128xbf16>, vector<8x8xf32> -> vector<8x8xf32>
    %cst_20 = arith.constant 0.353553385 : f32
    %30 = vector.broadcast %cst_20 : f32 to vector<8x8xf32>
    %31 = arith.mulf %29, %30 : vector<8x8xf32>
    %cst_21 = arith.constant dense<0xFF800000> : vector<8xf32>
    %32 = vector.multi_reduction <maximumf>, %31, %cst_21 [1] : vector<8x8xf32> to vector<8xf32>
    %33 = vector.shape_cast %32 : vector<8xf32> to vector<8x1xf32>
    %34 = vector.broadcast %33 : vector<8x1xf32> to vector<8x8xf32>
    %35 = arith.subf %31, %34 : vector<8x8xf32>
    %36 = math.exp %35 : vector<8x8xf32>
    %cst_22 = arith.constant dense<0.000000e+00> : vector<8xf32>
    %37 = vector.multi_reduction <add>, %36, %cst_22 [1] : vector<8x8xf32> to vector<8xf32>
    %38 = vector.shape_cast %37 : vector<8xf32> to vector<8x1xf32>
    %39 = tpu.reciprocal %38 {approx = true} : vector<8x1xf32> -> vector<8x1xf32>
    %40 = vector.broadcast %39 : vector<8x1xf32> to vector<8x8xf32>
    %41 = arith.mulf %36, %40 : vector<8x8xf32>
    %42 = arith.truncf %41 : vector<8x8xf32> to vector<8x8xbf16>
    %cst_23 = arith.constant dense<0.000000e+00> : vector<8x128xf32>
    %43 = tpu.matmul %42, %24, %cst_23 {dimension_numbers = #tpu.dot_dimension_numbers<[1], [0], [0], [1], [0, 0, 1, 1], [], []>} : vector<8x8xbf16>, vector<8x128xbf16>, vector<8x128xf32> -> vector<8x128xf32>
    %c0_24 = arith.constant 0 : index
    %c0_25 = arith.constant 0 : index
    %44 = vector.load %arg11[%c0_24, %c0_25] : memref<8x32xf32, #tpu.memory_space<vmem>>, vector<8x32xf32>
    %45 = arith.truncf %43 : vector<8x128xf32> to vector<8x128xbf16>
    %c0_26 = arith.constant 0 : index
    %c0_27 = arith.constant 0 : index
    %c0_28 = arith.constant 0 : index
    %46 = vector.load %arg8[%c0_26, %c0_27, %c0_28] : memref<1x128x32xbf16, #tpu.memory_space<vmem>>, vector<1x128x32xbf16>
    %47 = vector.shape_cast %46 : vector<1x128x32xbf16> to vector<128x32xbf16>
    %cst_29 = arith.constant dense<0.000000e+00> : vector<8x32xf32>
    %48 = tpu.matmul %45, %47, %cst_29 {dimension_numbers = #tpu.dot_dimension_numbers<[1], [0], [0], [1], [0, 0, 1, 1], [], []>} : vector<8x128xbf16>, vector<128x32xbf16>, vector<8x32xf32> -> vector<8x32xf32>
    %49 = arith.addf %44, %48 : vector<8x32xf32>
    %c0_30 = arith.constant 0 : index
    %c0_31 = arith.constant 0 : index
    %50 = vector.load %arg11[%c0_30, %c0_31] : memref<8x32xf32, #tpu.memory_space<vmem>>, vector<8x32xf32>
    tpu.vector_store %arg11[%c0_30, %c0_31], %49 {strides = array<i32>} : memref<8x32xf32, #tpu.memory_space<vmem>>, vector<8x32xf32>,
    %c3_i32 = arith.constant 3 : i32
    %51 = arith.cmpi eq, %arg1, %c3_i32 : i32
    %52 = arith.extui %51 : i1 to i32
    %c0_i32_32 = arith.constant 0 : i32
    %53 = arith.cmpi ne, %52, %c0_i32_32 : i32
    scf.if %53 {
      %c0_33 = arith.constant 0 : index
      %c0_34 = arith.constant 0 : index
      %54 = vector.load %arg11[%c0_33, %c0_34] : memref<8x32xf32, #tpu.memory_space<vmem>>, vector<8x32xf32>
      %c0_35 = arith.constant 0 : index
      %c0_36 = arith.constant 0 : index
      %55 = vector.load %arg9[%c0_35, %c0_36] : memref<1x32xf32, #tpu.memory_space<vmem>>, vector<1x32xf32>
      %56 = vector.broadcast %55 : vector<1x32xf32> to vector<8x32xf32>
      %57 = arith.addf %54, %56 : vector<8x32xf32>
      %58 = arith.truncf %57 : vector<8x32xf32> to vector<8x32xbf16>
      %c0_37 = arith.constant 0 : index
      %c0_38 = arith.constant 0 : index
      %c0_39 = arith.constant 0 : index
      %59 = vector.load %arg10[%c0_37, %c0_38, %c0_39] : memref<1x8x32xbf16, #tpu.memory_space<vmem>>, vector<1x8x32xbf16>
      %60 = vector.shape_cast %59 : vector<1x8x32xbf16> to vector<8x32xbf16>
      %61 = vector.shape_cast %58 : vector<8x32xbf16> to vector<1x8x32xbf16>
      tpu.vector_store %arg10[%c0_37, %c0_38, %c0_39], %61 {strides = array<i32>} : memref<1x8x32xbf16, #tpu.memory_space<vmem>>, vector<1x8x32xbf16>,
    } else {
    }
    return
  }
  func.func @transform_0(%arg0: i32, %arg1: i32) -> (i32, i32, i32) {
    %c0_i32 = arith.constant 0 : i32
    %c0_i32_0 = arith.constant 0 : i32
    %c0_i32_1 = arith.constant 0 : i32
    return %arg0, %c0_i32, %c0_i32_0 : i32, i32, i32
  }
  func.func @transform_1(%arg0: i32, %arg1: i32) -> (i32, i32, i32) {
    %c0_i32 = arith.constant 0 : i32
    %c0_i32_0 = arith.constant 0 : i32
    %c0_i32_1 = arith.constant 0 : i32
    return %arg0, %c0_i32, %c0_i32_0 : i32, i32, i32
  }
  func.func @transform_2(%arg0: i32, %arg1: i32) -> (i32, i32, i32) {
    %c0_i32 = arith.constant 0 : i32
    %c0_i32_0 = arith.constant 0 : i32
    %c0_i32_1 = arith.constant 0 : i32
    return %arg1, %c0_i32, %c0_i32_0 : i32, i32, i32
  }
  func.func @transform_3(%arg0: i32, %arg1: i32) -> (i32, i32, i32) {
    %c0_i32 = arith.constant 0 : i32
    %c0_i32_0 = arith.constant 0 : i32
    %c0_i32_1 = arith.constant 0 : i32
    return %arg1, %c0_i32, %c0_i32_0 : i32, i32, i32
  }
  func.func @transform_4(%arg0: i32, %arg1: i32) -> (i32, i32, i32) {
    %c0_i32 = arith.constant 0 : i32
    %c0_i32_0 = arith.constant 0 : i32
    %c0_i32_1 = arith.constant 0 : i32
    return %arg1, %c0_i32, %c0_i32_0 : i32, i32, i32
  }
  func.func @transform_5(%arg0: i32, %arg1: i32) -> (i32, i32, i32) {
    %c0_i32 = arith.constant 0 : i32
    %c0_i32_0 = arith.constant 0 : i32
    %c0_i32_1 = arith.constant 0 : i32
    return %arg1, %c0_i32, %c0_i32_0 : i32, i32, i32
  }
  func.func @transform_6(%arg0: i32, %arg1: i32) -> (i32, i32, i32) {
    %c0_i32 = arith.constant 0 : i32
    %c0_i32_0 = arith.constant 0 : i32
    %c0_i32_1 = arith.constant 0 : i32
    return %arg1, %c0_i32, %c0_i32_0 : i32, i32, i32
  }
  func.func @transform_7(%arg0: i32, %arg1: i32) -> (i32, i32) {
    %c0_i32 = arith.constant 0 : i32
    %c0_i32_0 = arith.constant 0 : i32
    %c0_i32_1 = arith.constant 0 : i32
    return %c0_i32, %c0_i32_0 : i32, i32
  }
  func.func @transform_8(%arg0: i32, %arg1: i32) -> (i32, i32, i32) {
    %c0_i32 = arith.constant 0 : i32
    %c0_i32_0 = arith.constant 0 : i32
    %c0_i32_1 = arith.constant 0 : i32
    return %arg0, %c0_i32, %c0_i32_0 : i32, i32, i32
  }
}

</mosaic_0001>

<llo_original>
// kernel: tpu_custom_call.1
$region0: #{tpu_custom_call.1}
  #allocation0 [shape = 'u32[]', space=smem, size = 0x4, offset = 0x4, fixed_abs, tag = 'smem constant byte address 0x4 - core index']
  #allocation1 [shape = 'u32[144,128]{1,0:T(1,128)}', space=vmem, size = 0x12000, scoped, tag = 'internal scratch']
  %s0 = inlined_call_operand.hbm [shape: f32[8,128], index: 0, kind: input, shape index: {}]
  %s1 = inlined_call_operand.hbm [shape: f32[8,128], index: 1, kind: output, shape index: {}]
  %s2 = sld [smem:[#allocation0]]
  $region18: #{tpu_custom_call.1} parent=0
    _
  %s4 = ssub.s32 1, %s2
  %s5 = scalar_select 0, %s4, %s2
  $region1: #{tpu_custom_call.1} parent=0
    #allocation2 [shape = 'u8[4096]{0}', space=vmem, size = 0x1000, scoped, tag = 'input window, operand 0, single buffered']
    #allocation3 [shape = 's32[1]{0}', space=sflag, size = 0x4, scoped, tag = 'scoped memory for tpu_custom_call.1']
    #allocation4 [shape = 's32[1]{0}', space=sflag, size = 0x4, scoped, tag = 'scoped memory for tpu_custom_call.1']
    #allocation5 [shape = 'u8[4096]{0}', space=vmem, size = 0x1000, scoped, tag = 'output window, operand 0, single buffered']
    %6 = vsyncpa [#allocation3], 0
    %7 = vsyncpa [#allocation4], 0
    // Predicated region
    $region2: #{tpu_custom_call.1} parent=1 // pred_check
      _
    $region3: #{tpu_custom_call.1} parent=1 // pred_check_branch
      %9 = sbr.rel (0) target = $region5
    $region4: #{tpu_custom_call.1} parent=1 // pred_region
      %s11 = ssub.s32 128, 128
      %12 = vsyncadd [#allocation3], %s11
      %s14 = sshll.u32 [#allocation2], 4
      %s15 = int_to_ptr.vmem [resolvable:$true] %s14
      %17 = dma.hbm_to_vmem [thread:$0]  %s0, 128, %s15, [#allocation3]
    $region5: #{tpu_custom_call.1} parent=1 // pred_fallthru
      _
    // Predicated region
    $region6: #{tpu_custom_call.1} parent=1 // pred_check
      _
    $region7: #{tpu_custom_call.1} parent=1 // pred_check_branch
      %19 = sbr.rel (0) target = $region9
    $region8: #{tpu_custom_call.1} parent=1 // pred_region
      %20 = dma.done [#allocation3], 128
    $region9: #{tpu_custom_call.1} parent=1 // pred_fallthru
      _
    %v21 = vld [vmem:[#allocation2] sm:$0xff]
    %22 = vst [vmem:[#allocation5] sm:$0xff] %v21
    // Predicated region
    $region10: #{tpu_custom_call.1} parent=1 // pred_check
      _
    $region11: #{tpu_custom_call.1} parent=1 // pred_check_branch
      %24 = sbr.rel (0) target = $region13
    $region12: #{tpu_custom_call.1} parent=1 // pred_region
      %s26 = ssub.s32 128, 128
      %27 = vsyncadd [#allocation4], %s26
      %s29 = sshll.u32 [#allocation5], 4
      %s30 = int_to_ptr.vmem [resolvable:$true] %s29
      %32 = dma.vmem_to_hbm [thread:$0]  %s30, 128, %s1, [#allocation4]
    $region13: #{tpu_custom_call.1} parent=1 // pred_fallthru
      _
    // Predicated region
    $region14: #{tpu_custom_call.1} parent=1 // pred_check
      _
    $region15: #{tpu_custom_call.1} parent=1 // pred_check_branch
      %34 = sbr.rel (0) target = $region17
    $region16: #{tpu_custom_call.1} parent=1 // pred_region
      %35 = dma.done [#allocation4], 128
    $region17: #{tpu_custom_call.1} parent=1 // pred_fallthru
      _
    %36 = vsyncpa [#allocation3], 1
    %37 = vsyncpa [#allocation4], 1

// kernel: tpu_custom_call.1
$region0: #{tpu_custom_call.1}
  #allocation0 [shape = 'u32[]', space=smem, size = 0x4, offset = 0x4, fixed_abs, tag = 'smem constant byte address 0x4 - core index']
  #allocation1 [shape = 'u32[144,128]{1,0:T(1,128)}', space=vmem, size = 0x12000, scoped, tag = 'internal scratch']
  #allocation2 [shape = 'f32[8,32]{1,0:T(8,128)}', space=vmem, size = 0x1000, scoped, tag = 'scratch operand']
  %s0 = inlined_call_operand.vmem [shape: f32[2,8,32], index: 0, kind: input, shape index: {}]
  %s1 = inlined_call_operand.vmem [shape: f32[2,8,32], index: 1, kind: input, shape index: {}]
  %s2 = inlined_call_operand.vmem [shape: bf16[4,32,256], index: 2, kind: input, shape index: {}]
  %s3 = inlined_call_operand.vmem [shape: f32[4,1,256], index: 3, kind: input, shape index: {}]
  %s4 = inlined_call_operand.vmem [shape: bf16[4,32,128], index: 4, kind: input, shape index: {}]
  %s5 = inlined_call_operand.vmem [shape: f32[4,1,128], index: 5, kind: input, shape index: {}]
  %s6 = inlined_call_operand.vmem [shape: bf16[4,128,32], index: 6, kind: input, shape index: {}]
  %s7 = inlined_call_operand.vmem [shape: f32[1,32], index: 7, kind: input, shape index: {}]
  %s8 = inlined_call_operand.hbm [shape: bf16[2,8,32], index: 8, kind: output, shape index: {}]
  %s9 = sld [smem:[#allocation0]]
  $region73: #{tpu_custom_call.1} parent=0
    _
  %s11 = ssub.s32 1, %s9
  %s12 = scalar_select 0, %s11, %s9
  $region1: #{tpu_custom_call.1} parent=0
    #allocation3 [shape = 'u8[4096]{0}', space=vmem, size = 0x1000, scoped, tag = 'output window, operand 0']
    #allocation4 [shape = 's32[2]{0}', space=sflag, size = 0x8, scoped, tag = 'scoped memory for tpu_custom_call.1']
    %13 = vsyncpa [#allocation4], 0
    %s14 = scalar_lea.sflag [#allocation4], 1
    %15 = vsyncpa %s14, 0
    loop: start=0, step=1, limit=10
    $region2: #{tpu_custom_call.1} parent=1 // loop_pre_header
      _
    $region3: #{tpu_custom_call.1} parent=1 // loop_header
      %s17 = sphi 0, %s21
      %p18 = scmp.ge.s32.totalorder %s17, 10
      %s24 = sphi 0, %s36
      %s25 = sphi 0, %s32
      %s26 = sphi 0, %s24
      %s27 = sphi 0, %s25
      %s28 = sphi 0, %s26
      %s29 = sphi 0, %s27
      %s39 = sphi 0, %s41
      %s42 = sphi 0, %s39
      %s43 = sphi 0, %s42
      %s59 = sphi 0, %s43
      %s65 = sphi 0, %s67
      %s68 = sphi 0, %s65
      %s69 = sphi 0, %s68
      %s85 = sphi 0, %s69
      %s91 = sphi 0, %s93
      %s94 = sphi 0, %s91
      %s95 = sphi 0, %s94
      %s111 = sphi 0, %s95
      %s117 = sphi 0, %s119
      %s120 = sphi 0, %s117
      %s121 = sphi 0, %s120
      %s137 = sphi 0, %s121
      %s143 = sphi 0, %s145
      %s146 = sphi 0, %s143
      %s147 = sphi 0, %s146
      %s163 = sphi 0, %s147
      %s169 = sphi 0, %s171
      %s172 = sphi 0, %s169
      %s173 = sphi 0, %s172
      %s189 = sphi 0, %s173
      %s195 = sphi 0, %s197
      %s198 = sphi 0, %s195
      %s199 = sphi 0, %s198
      %s215 = sphi 0, %s199
      %s219 = sphi 0, %s219
      %s221 = sphi 0, %s219
      %s222 = sphi 0, %s221
      %s236 = sphi 0, %s222
      %s242 = sphi 0, %s244
      %s245 = sphi 0, %s242
      %s246 = sphi 0, %s245
      %s262 = sphi 0, %s246
    $region4: #{tpu_custom_call.1} parent=1 // loop_header_branch
      %20 = sbr.rel (%p18) target = $region8
    $region5: #{tpu_custom_call.1} parent=1 // loop_body
      %s22 = ssub.s32 %s17, 1
      %s23 = ssub.s32 %s17, 2
      %s30 = sadd.s32 1, %s25
      %p31 = scmp.ge.s32.totalorder %s30, 4
      %s32 = scalar_select %p31, 0, %s30
      %s33 = sadd.s32 1, %s24
      %s34 = scalar_select %p31, %s33, %s24
      %p35 = scmp.ge.s32.totalorder %s34, 2
      %s36 = scalar_select %p35, 0, %s34
      %s37 = ssub.s32 %s24, %s36
      %p38 = scmp.eq.s32.totalorder %s37, 0
      %s40 = sadd.s32 %s39, 1
      %s41 = scalar_select %p38, %s39, %s40
      %p44 = pneg %p38
      %p45 = scmp.eq.s32.totalorder %s17, 7
      %p46 = por %p44, %p45
      %p47 = scmp.ne.s32.totalorder %s39, %s42
      %p48 = scmp.eq.s32.totalorder %s17, 0
      %p49 = por %p47, %p48
      %p50 = scmp.ne.s32.totalorder %s39, %s42
      %p51 = scmp.eq.s32.totalorder %s22, 7
      %p52 = por %p50, %p51
      %p53 = scmp.ne.s32.totalorder %s42, %s43
      %p54 = scmp.eq.s32.totalorder %s22, 0
      %p55 = por %p53, %p54
      %p56 = scmp.ne.s32.totalorder %s42, %s43
      %p57 = scmp.eq.s32.totalorder %s23, 7
      %p58 = por %p56, %p57
      %p60 = scmp.ne.s32.totalorder %s43, %s59
      %p61 = scmp.eq.s32.totalorder %s23, 0
      %p62 = por %p60, %p61
      %s63 = ssub.s32 %s24, %s36
      %p64 = scmp.eq.s32.totalorder %s63, 0
      %s66 = sadd.s32 %s65, 1
      %s67 = scalar_select %p64, %s65, %s66
      %p70 = pneg %p64
      %p71 = scmp.eq.s32.totalorder %s17, 7
      %p72 = por %p70, %p71
      %p73 = scmp.ne.s32.totalorder %s65, %s68
      %p74 = scmp.eq.s32.totalorder %s17, 0
      %p75 = por %p73, %p74
      %p76 = scmp.ne.s32.totalorder %s65, %s68
      %p77 = scmp.eq.s32.totalorder %s22, 7
      %p78 = por %p76, %p77
      %p79 = scmp.ne.s32.totalorder %s68, %s69
      %p80 = scmp.eq.s32.totalorder %s22, 0
      %p81 = por %p79, %p80
      %p82 = scmp.ne.s32.totalorder %s68, %s69
      %p83 = scmp.eq.s32.totalorder %s23, 7
      %p84 = por %p82, %p83
      %p86 = scmp.ne.s32.totalorder %s69, %s85
      %p87 = scmp.eq.s32.totalorder %s23, 0
      %p88 = por %p86, %p87
      %s89 = ssub.s32 %s25, %s32
      %p90 = scmp.eq.s32.totalorder %s89, 0
      %s92 = sadd.s32 %s91, 1
      %s93 = scalar_select %p90, %s91, %s92
      %p96 = pneg %p90
      %p97 = scmp.eq.s32.totalorder %s17, 7
      %p98 = por %p96, %p97
      %p99 = scmp.ne.s32.totalorder %s91, %s94
      %p100 = scmp.eq.s32.totalorder %s17, 0
      %p101 = por %p99, %p100
      %p102 = scmp.ne.s32.totalorder %s91, %s94
      %p103 = scmp.eq.s32.totalorder %s22, 7
      %p104 = por %p102, %p103
      %p105 = scmp.ne.s32.totalorder %s94, %s95
      %p106 = scmp.eq.s32.totalorder %s22, 0
      %p107 = por %p105, %p106
      %p108 = scmp.ne.s32.totalorder %s94, %s95
      %p109 = scmp.eq.s32.totalorder %s23, 7
      %p110 = por %p108, %p109
      %p112 = scmp.ne.s32.totalorder %s95, %s111
      %p113 = scmp.eq.s32.totalorder %s23, 0
      %p114 = por %p112, %p113
      %s115 = ssub.s32 %s25, %s32
      %p116 = scmp.eq.s32.totalorder %s115, 0
      %s118 = sadd.s32 %s117, 1
      %s119 = scalar_select %p116, %s117, %s118
      %p122 = pneg %p116
      %p123 = scmp.eq.s32.totalorder %s17, 7
      %p124 = por %p122, %p123
      %p125 = scmp.ne.s32.totalorder %s117, %s120
      %p126 = scmp.eq.s32.totalorder %s17, 0
      %p127 = por %p125, %p126
      %p128 = scmp.ne.s32.totalorder %s117, %s120
      %p129 = scmp.eq.s32.totalorder %s22, 7
      %p130 = por %p128, %p129
      %p131 = scmp.ne.s32.totalorder %s120, %s121
      %p132 = scmp.eq.s32.totalorder %s22, 0
      %p133 = por %p131, %p132
      %p134 = scmp.ne.s32.totalorder %s120, %s121
      %p135 = scmp.eq.s32.totalorder %s23, 7
      %p136 = por %p134, %p135
      %p138 = scmp.ne.s32.totalorder %s121, %s137
      %p139 = scmp.eq.s32.totalorder %s23, 0
      %p140 = por %p138, %p139
      %s141 = ssub.s32 %s25, %s32
      %p142 = scmp.eq.s32.totalorder %s141, 0
      %s144 = sadd.s32 %s143, 1
      %s145 = scalar_select %p142, %s143, %s144
      %p148 = pneg %p142
      %p149 = scmp.eq.s32.totalorder %s17, 7
      %p150 = por %p148, %p149
      %p151 = scmp.ne.s32.totalorder %s143, %s146
      %p152 = scmp.eq.s32.totalorder %s17, 0
      %p153 = por %p151, %p152
      %p154 = scmp.ne.s32.totalorder %s143, %s146
      %p155 = scmp.eq.s32.totalorder %s22, 7
      %p156 = por %p154, %p155
      %p157 = scmp.ne.s32.totalorder %s146, %s147
      %p158 = scmp.eq.s32.totalorder %s22, 0
      %p159 = por %p157, %p158
      %p160 = scmp.ne.s32.totalorder %s146, %s147
      %p161 = scmp.eq.s32.totalorder %s23, 7
      %p162 = por %p160, %p161
      %p164 = scmp.ne.s32.totalorder %s147, %s163
      %p165 = scmp.eq.s32.totalorder %s23, 0
      %p166 = por %p164, %p165
      %s167 = ssub.s32 %s25, %s32
      %p168 = scmp.eq.s32.totalorder %s167, 0
      %s170 = sadd.s32 %s169, 1
      %s171 = scalar_select %p168, %s169, %s170
      %p174 = pneg %p168
      %p175 = scmp.eq.s32.totalorder %s17, 7
      %p176 = por %p174, %p175
      %p177 = scmp.ne.s32.totalorder %s169, %s172
      %p178 = scmp.eq.s32.totalorder %s17, 0
      %p179 = por %p177, %p178
      %p180 = scmp.ne.s32.totalorder %s169, %s172
      %p181 = scmp.eq.s32.totalorder %s22, 7
      %p182 = por %p180, %p181
      %p183 = scmp.ne.s32.totalorder %s172, %s173
      %p184 = scmp.eq.s32.totalorder %s22, 0
      %p185 = por %p183, %p184
      %p186 = scmp.ne.s32.totalorder %s172, %s173
      %p187 = scmp.eq.s32.totalorder %s23, 7
      %p188 = por %p186, %p187
      %p190 = scmp.ne.s32.totalorder %s173, %s189
      %p191 = scmp.eq.s32.totalorder %s23, 0
      %p192 = por %p190, %p191
      %s193 = ssub.s32 %s25, %s32
      %p194 = scmp.eq.s32.totalorder %s193, 0
      %s196 = sadd.s32 %s195, 1
      %s197 = scalar_select %p194, %s195, %s196
      %p200 = pneg %p194
      %p201 = scmp.eq.s32.totalorder %s17, 7
      %p202 = por %p200, %p201
      %p203 = scmp.ne.s32.totalorder %s195, %s198
      %p204 = scmp.eq.s32.totalorder %s17, 0
      %p205 = por %p203, %p204
      %p206 = scmp.ne.s32.totalorder %s195, %s198
      %p207 = scmp.eq.s32.totalorder %s22, 7
      %p208 = por %p206, %p207
      %p209 = scmp.ne.s32.totalorder %s198, %s199
      %p210 = scmp.eq.s32.totalorder %s22, 0
      %p211 = por %p209, %p210
      %p212 = scmp.ne.s32.totalorder %s198, %s199
      %p213 = scmp.eq.s32.totalorder %s23, 7
      %p214 = por %p212, %p213
      %p216 = scmp.ne.s32.totalorder %s199, %s215
      %p217 = scmp.eq.s32.totalorder %s23, 0
      %p218 = por %p216, %p217
      %s220 = sadd.s32 %s219, 1
      %p223 = scmp.eq.s32.totalorder %s17, 7
      %p224 = scmp.ne.s32.totalorder %s219, %s221
      %p225 = scmp.eq.s32.totalorder %s17, 0
      %p226 = por %p224, %p225
      %p227 = scmp.ne.s32.totalorder %s219, %s221
      %p228 = scmp.eq.s32.totalorder %s22, 7
      %p229 = por %p227, %p228
      %p230 = scmp.ne.s32.totalorder %s221, %s222
      %p231 = scmp.eq.s32.totalorder %s22, 0
      %p232 = por %p230, %p231
      %p233 = scmp.ne.s32.totalorder %s221, %s222
      %p234 = scmp.eq.s32.totalorder %s23, 7
      %p235 = por %p233, %p234
      %p237 = scmp.ne.s32.totalorder %s222, %s236
      %p238 = scmp.eq.s32.totalorder %s23, 0
      %p239 = por %p237, %p238
      %s240 = ssub.s32 %s24, %s36
      %p241 = scmp.eq.s32.totalorder %s240, 0
      %s243 = sadd.s32 %s242, 1
      %s244 = scalar_select %p241, %s242, %s243
      %p247 = pneg %p241
      %p248 = scmp.eq.s32.totalorder %s17, 7
      %p249 = por %p247, %p248
      %p250 = scmp.ne.s32.totalorder %s242, %s245
      %p251 = scmp.eq.s32.totalorder %s17, 0
      %p252 = por %p250, %p251
      %p253 = scmp.ne.s32.totalorder %s242, %s245
      %p254 = scmp.eq.s32.totalorder %s22, 7
      %p255 = por %p253, %p254
      %p256 = scmp.ne.s32.totalorder %s245, %s246
      %p257 = scmp.eq.s32.totalorder %s22, 0
      %p258 = por %p256, %p257
      %p259 = scmp.ne.s32.totalorder %s245, %s246
      %p260 = scmp.eq.s32.totalorder %s23, 7
      %p261 = por %p259, %p260
      %p263 = scmp.ne.s32.totalorder %s246, %s262
      %p264 = scmp.eq.s32.totalorder %s23, 0
      %p265 = por %p263, %p264
      %p266 = scmp.le.s32.totalorder 1, %s17
      %p267 = scmp.lt.s32.totalorder %s17, 9
      %p268 = pnand %p266, %p267
      %p269 = pneg %p268
      // Predicated region
      $region9: #{tpu_custom_call.1} parent=5 // pred_check
        _
      $region10: #{tpu_custom_call.1} parent=5 // pred_check_branch
        %271 = sbr.rel (%p268) target = $region12
      $region11: #{tpu_custom_call.1} parent=5 // pred_region
        %s272 = ssub.s32 %s17, 1
        // Predicated region
        $region13: #{tpu_custom_call.1} parent=11 // pred_check
          %p273 = pneg %p232
        $region14: #{tpu_custom_call.1} parent=11 // pred_check_branch
          %275 = sbr.rel (%p273) target = $region16
        $region15: #{tpu_custom_call.1} parent=11 // pred_region
          _
        $region16: #{tpu_custom_call.1} parent=11 // pred_fallthru
          _
      $region12: #{tpu_custom_call.1} parent=5 // pred_fallthru
        _
      %p276 = scmp.lt.s32.totalorder %s17, 8
      // Predicated region
      $region17: #{tpu_custom_call.1} parent=5 // pred_check
        %p277 = pneg %p276
      $region18: #{tpu_custom_call.1} parent=5 // pred_check_branch
        %279 = sbr.rel (%p277) target = $region20
      $region19: #{tpu_custom_call.1} parent=5 // pred_region
        // Predicated region
        $region21: #{tpu_custom_call.1} parent=19 // pred_check
          %p280 = pneg %p49
        $region22: #{tpu_custom_call.1} parent=19 // pred_check_branch
          %282 = sbr.rel (%p280) target = $region24
        $region23: #{tpu_custom_call.1} parent=19 // pred_region
          %p283 = scmp.lt.s32.totalorder %s24, 1
          %s284 = scalar_select %p283, %s24, 1
          %s285 = smul.addr %s284, 8
          %s286 = scalar_lea.vmem %s0, %s285
        $region24: #{tpu_custom_call.1} parent=19 // pred_fallthru
          _
        // Predicated region
        $region25: #{tpu_custom_call.1} parent=19 // pred_check
          %p287 = pneg %p75
        $region26: #{tpu_custom_call.1} parent=19 // pred_check_branch
          %289 = sbr.rel (%p287) target = $region28
        $region27: #{tpu_custom_call.1} parent=19 // pred_region
          %p290 = scmp.lt.s32.totalorder %s24, 1
          %s291 = scalar_select %p290, %s24, 1
          %s292 = smul.addr %s291, 8
          %s293 = scalar_lea.vmem %s1, %s292
        $region28: #{tpu_custom_call.1} parent=19 // pred_fallthru
          _
        // Predicated region
        $region29: #{tpu_custom_call.1} parent=19 // pred_check
          %p294 = pneg %p101
        $region30: #{tpu_custom_call.1} parent=19 // pred_check_branch
          %296 = sbr.rel (%p294) target = $region32
        $region31: #{tpu_custom_call.1} parent=19 // pred_region
          %p297 = scmp.lt.s32.totalorder %s25, 3
          %s298 = scalar_select %p297, %s25, 3
          %s299 = smul.addr %s298, 8
          %s300 = smul.addr %s299, 4
          %s301 = scalar_lea.vmem %s2, %s300
        $region32: #{tpu_custom_call.1} parent=19 // pred_fallthru
          _
        // Predicated region
        $region33: #{tpu_custom_call.1} parent=19 // pred_check
          %p302 = pneg %p127
        $region34: #{tpu_custom_call.1} parent=19 // pred_check_branch
          %304 = sbr.rel (%p302) target = $region36
        $region35: #{tpu_custom_call.1} parent=19 // pred_region
          %p305 = scmp.lt.s32.totalorder %s25, 3
          %s306 = scalar_select %p305, %s25, 3
          %s307 = smul.addr %s306, 2
          %s308 = scalar_lea.vmem %s3, %s307
        $region36: #{tpu_custom_call.1} parent=19 // pred_fallthru
          _
        // Predicated region
        $region37: #{tpu_custom_call.1} parent=19 // pred_check
          %p309 = pneg %p153
        $region38: #{tpu_custom_call.1} parent=19 // pred_check_branch
          %311 = sbr.rel (%p309) target = $region40
        $region39: #{tpu_custom_call.1} parent=19 // pred_region
          %p312 = scmp.lt.s32.totalorder %s25, 3
          %s313 = scalar_select %p312, %s25, 3
          %s314 = smul.addr %s313, 4
          %s315 = smul.addr %s314, 4
          %s316 = scalar_lea.vmem %s4, %s315
        $region40: #{tpu_custom_call.1} parent=19 // pred_fallthru
          _
        // Predicated region
        $region41: #{tpu_custom_call.1} parent=19 // pred_check
          %p317 = pneg %p179
        $region42: #{tpu_custom_call.1} parent=19 // pred_check_branch
          %319 = sbr.rel (%p317) target = $region44
        $region43: #{tpu_custom_call.1} parent=19 // pred_region
          %p320 = scmp.lt.s32.totalorder %s25, 3
          %s321 = scalar_select %p320, %s25, 3
          %s322 = scalar_lea.vmem %s5, %s321
        $region44: #{tpu_custom_call.1} parent=19 // pred_fallthru
          _
        // Predicated region
        $region45: #{tpu_custom_call.1} parent=19 // pred_check
          %p323 = pneg %p205
        $region46: #{tpu_custom_call.1} parent=19 // pred_check_branch
          %325 = sbr.rel (%p323) target = $region48
        $region47: #{tpu_custom_call.1} parent=19 // pred_region
          %p326 = scmp.lt.s32.totalorder %s25, 3
          %s327 = scalar_select %p326, %s25, 3
          %s328 = smul.addr %s327, 16
          %s329 = smul.addr %s328, 4
          %s330 = scalar_lea.vmem %s6, %s329
        $region48: #{tpu_custom_call.1} parent=19 // pred_fallthru
          _
      $region20: #{tpu_custom_call.1} parent=5 // pred_fallthru
        _
      %p331 = scmp.le.s32.totalorder 1, %s17
      %p332 = scmp.lt.s32.totalorder %s17, 9
      %p333 = pnand %p331, %p332
      %p334 = pneg %p333
      // Predicated region
      $region49: #{tpu_custom_call.1} parent=5 // pred_check
        _
      $region50: #{tpu_custom_call.1} parent=5 // pred_check_branch
        %336 = sbr.rel (%p333) target = $region52
      $region51: #{tpu_custom_call.1} parent=5 // pred_region
        %s337 = ssub.s32 %s17, 1
        %p338 = scmp.lt.s32.totalorder %s26, 1
        %s339 = scalar_select %p338, %s26, 1
        %s340 = smul.addr %s339, 8
        %s341 = scalar_lea.vmem %s0, %s340
        %p342 = pneg %p55
        %p343 = pneg %p52
        %p344 = scmp.lt.s32.totalorder %s26, 1
        %s345 = scalar_select %p344, %s26, 1
        %s346 = smul.addr %s345, 8
        %s347 = scalar_lea.vmem %s1, %s346
        %p348 = pneg %p81
        %p349 = pneg %p78
        %p350 = scmp.lt.s32.totalorder %s27, 3
        %s351 = scalar_select %p350, %s27, 3
        %s352 = smul.addr %s351, 8
        %s353 = smul.addr %s352, 4
        %s354 = scalar_lea.vmem %s2, %s353
        %p355 = pneg %p107
        %p356 = pneg %p104
        %p357 = scmp.lt.s32.totalorder %s27, 3
        %s358 = scalar_select %p357, %s27, 3
        %s359 = smul.addr %s358, 2
        %s360 = scalar_lea.vmem %s3, %s359
        %p361 = pneg %p133
        %p362 = pneg %p130
        %p363 = scmp.lt.s32.totalorder %s27, 3
        %s364 = scalar_select %p363, %s27, 3
        %s365 = smul.addr %s364, 4
        %s366 = smul.addr %s365, 4
        %s367 = scalar_lea.vmem %s4, %s366
        %p368 = pneg %p159
        %p369 = pneg %p156
        %p370 = scmp.lt.s32.totalorder %s27, 3
        %s371 = scalar_select %p370, %s27, 3
        %s372 = scalar_lea.vmem %s5, %s371
        %p373 = pneg %p185
        %p374 = pneg %p182
        %p375 = scmp.lt.s32.totalorder %s27, 3
        %s376 = scalar_select %p375, %s27, 3
        %s377 = smul.addr %s376, 16
        %s378 = smul.addr %s377, 4
        %s379 = scalar_lea.vmem %s6, %s378
        %p380 = pneg %p211
        %p381 = pneg %p208
        %p382 = pneg %p232
        %p383 = pneg %p229
        %p384 = pneg %p258
        %p385 = pneg %p255
        %s386 = sand.u32 %s245, 1
        %s387 = scalar_lea.sflag [#allocation4], %s386
        %s388 = sand.u32 %s245, 1
        %s389 = smul.addr %s388, 4
        %s390 = scalar_lea.vmem [#allocation3], %s389
        %p391 = scmp.lt.s32.totalorder %s26, 1
        %s392 = scalar_select %p391, %s26, 1
        %s393 = smul.addr %s392, 8
        %s394 = scalar_lea.vmem %s0, %s393
        %p395 = scmp.lt.s32.totalorder %s26, 1
        %s396 = scalar_select %p395, %s26, 1
        %s397 = smul.addr %s396, 8
        %s398 = scalar_lea.vmem %s1, %s397
        %p399 = scmp.lt.s32.totalorder %s27, 3
        %s400 = scalar_select %p399, %s27, 3
        %s401 = smul.addr %s400, 8
        %s402 = smul.addr %s401, 4
        %s403 = scalar_lea.vmem %s2, %s402
        %p404 = scmp.lt.s32.totalorder %s27, 3
        %s405 = scalar_select %p404, %s27, 3
        %s406 = smul.addr %s405, 2
        %s407 = scalar_lea.vmem %s3, %s406
        %p408 = scmp.lt.s32.totalorder %s27, 3
        %s409 = scalar_select %p408, %s27, 3
        %s410 = smul.addr %s409, 4
        %s411 = smul.addr %s410, 4
        %s412 = scalar_lea.vmem %s4, %s411
        %p413 = scmp.lt.s32.totalorder %s27, 3
        %s414 = scalar_select %p413, %s27, 3
        %s415 = scalar_lea.vmem %s5, %s414
        %p416 = scmp.lt.s32.totalorder %s27, 3
        %s417 = scalar_select %p416, %s27, 3
        %s418 = smul.addr %s417, 16
        %s419 = smul.addr %s418, 4
        %s420 = scalar_lea.vmem %s6, %s419
        %p422 = scmp.eq.s32.totalorder %s27, 0
        // Predicated region
        $region53: #{tpu_custom_call.1} parent=51 // pred_check
          %p423 = pneg %p422
        $region54: #{tpu_custom_call.1} parent=51 // pred_check_branch
          %425 = sbr.rel (%p423) target = $region56
        $region55: #{tpu_custom_call.1} parent=51 // pred_region
          %vm426 = vcmask 261120
          %427 = vst.msk [vmem:[#allocation2] sm:$0xff] %vm426, 0.0
        $region56: #{tpu_custom_call.1} parent=51 // pred_fallthru
          _
        %v428 = vld [vmem:[%s394] sm:$0xff]
        %v429 = vld [vmem:[%s398] sm:$0xff]
        %v430 = vadd.f32 %v428, %v429
        %v431 = vpack.c.bf16 %v430, %v430
        %v432 = vld [vmem:[%s403] sm:$0xff]
        %v433 = vld [vmem:[%s403 + $0x8] sm:$0xff]
        %v434 = vld [vmem:[%s403 + $0x10] sm:$0xff]
        %v435 = vld [vmem:[%s403 + $0x18] sm:$0xff]
        %v436 = vld [vmem:[%s407] sm:$0x3]
        %v438 = vlaneseq
        %v439 = vshrl.u32 %v438, 7
        %v440 = vsub.s32 0, %v439
        %v441 = vrot.slane %v436, %v440
        %v442 = vlaneseq
        %v443 = vshrl.u32 %v442, 7
        %v444 = vsub.s32 1, %v443
        %v445 = vrot.slane %v436, %v444
        %v452 = vunpack.c.l.b16 %v432
        %v453 = vunpack.c.h.b16 %v432
        %v454 = vunpack.c.l.b16 %v433
        %v455 = vunpack.c.h.b16 %v433
        %v456 = vunpack.c.l.b16 %v434
        %v457 = vunpack.c.h.b16 %v434
        %v458 = vunpack.c.l.b16 %v435
        %v459 = vunpack.c.h.b16 %v435
        %v460 = vpack.c.b16 %v454, %v452
        %v461 = vpack.c.b16 %v455, %v453
        %v462 = vpack.c.b16 %v458, %v456
        %v463 = vpack.c.b16 %v459, %v457
        %vm468 = vcmask 261120
        %v470 = vsel %vm468, %v431, 0
        %472 = vmatprep.subr.bf16.mxu0 %v461
        %473 = vmatpush1.bf16.msra.mxu0 %v460
        %474 = vmatprep.subr.bf16.mxu0 %v463
        %475 = vmatpush1.bf16.msra.mxu0 %v462
        %476 = vmatprep.subr.bf16.mxu0 0
        %477 = vmatpush1.bf16.msra.mxu0 0
        %478 = vmatprep.subr.bf16.mxu0 0
        %479 = vmatpush1.bf16.msra.mxu0 0
        %480 = vmatprep.subr.bf16.mxu0 0
        %481 = vmatpush1.bf16.msra.mxu0 0
        %482 = vmatprep.subr.bf16.mxu0 0
        %483 = vmatpush1.bf16.msra.mxu0 0
        %484 = vmatprep.subr.bf16.mxu0 0
        %485 = vmatpush1.bf16.msra.mxu0 0
        %486 = vmatprep.subr.bf16.mxu0 0
        %487 = vmatpush1.bf16.msra.mxu0 0
        %488 = vmatprep.subr.bf16.mxu0 0
        %489 = vmatpush1.bf16.msra.mxu0 0
        %490 = vmatprep.subr.bf16.mxu0 0
        %491 = vmatpush1.bf16.msra.mxu0 0
        %492 = vmatprep.subr.bf16.mxu0 0
        %493 = vmatpush1.bf16.msra.mxu0 0
        %494 = vmatprep.subr.bf16.mxu0 0
        %495 = vmatpush1.bf16.msra.mxu0 0
        %496 = vmatprep.subr.bf16.mxu0 0
        %497 = vmatpush1.bf16.msra.mxu0 0
        %498 = vmatprep.subr.bf16.mxu0 0
        %499 = vmatpush1.bf16.msra.mxu0 0
        %500 = vmatprep.subr.bf16.mxu0 0
        %501 = vmatpush1.bf16.msra.mxu0 0
        %502 = vmatprep.subr.bf16.mxu0 0
        %503 = vmatpush1.bf16.msra.mxu0 0
        %504 = vmatprep.mubr.bf16.mxu0 0
        %505 = vmatmul.mubr.bf16.gmra.mrb[0].mxu0 %v470
        %v506 = vpop.f32.mrb[0].mxu0
        %v507 = vadd.f32 %v441, %v506
        %v508 = vpop.f32.mrb[0].mxu0
        %v509 = vadd.f32 %v445, %v508
        %v510 = vpop.f32.mrb[0].mxu0
        %v511 = vpop.f32.mrb[0].mxu0
        %512 = vdwg.mxu0
        %v513 = vpack.c.bf16 %v428, %v428
        %v514 = vld [vmem:[%s412] sm:$0xf]
        %v515 = vld [vmem:[%s412 + $0x4] sm:$0xf]
        %v516 = vld [vmem:[%s412 + $0x8] sm:$0xf]
        %v517 = vld [vmem:[%s412 + $0xc] sm:$0xf]
        %v518 = vld [vmem:[%s415] sm:$0x1]
        %v520 = vlaneseq
        %v521 = vshrl.u32 %v520, 7
        %v522 = vsub.s32 0, %v521
        %v523 = vrot.slane %v518, %v522
        %v529 = vunpack.c.l.b16 %v514
        %v530 = vunpack.c.l.b16 %v515
        %v531 = vunpack.c.l.b16 %v516
        %v532 = vunpack.c.l.b16 %v517
        %v533 = vpack.c.b16 %v530, %v529
        %v534 = vpack.c.b16 %v532, %v531
        %v538 = vsel %vm468, %v513, 0
        %540 = vmatprep.subr.bf16.mxu0 0
        %541 = vmatpush1.bf16.msra.mxu0 %v533
        %542 = vmatprep.subr.bf16.mxu0 0
        %543 = vmatpush1.bf16.msra.mxu0 %v534
        %544 = vmatprep.subr.bf16.mxu0 0
        %545 = vmatpush1.bf16.msra.mxu0 0
        %546 = vmatprep.subr.bf16.mxu0 0
        %547 = vmatpush1.bf16.msra.mxu0 0
        %548 = vmatprep.subr.bf16.mxu0 0
        %549 = vmatpush1.bf16.msra.mxu0 0
        %550 = vmatprep.subr.bf16.mxu0 0
        %551 = vmatpush1.bf16.msra.mxu0 0
        %552 = vmatprep.subr.bf16.mxu0 0
        %553 = vmatpush1.bf16.msra.mxu0 0
        %554 = vmatprep.subr.bf16.mxu0 0
        %555 = vmatpush1.bf16.msra.mxu0 0
        %556 = vmatprep.subr.bf16.mxu0 0
        %557 = vmatpush1.bf16.msra.mxu0 0
        %558 = vmatprep.subr.bf16.mxu0 0
        %559 = vmatpush1.bf16.msra.mxu0 0
        %560 = vmatprep.subr.bf16.mxu0 0
        %561 = vmatpush1.bf16.msra.mxu0 0
        %562 = vmatprep.subr.bf16.mxu0 0
        %563 = vmatpush1.bf16.msra.mxu0 0
        %564 = vmatprep.subr.bf16.mxu0 0
        %565 = vmatpush1.bf16.msra.mxu0 0
        %566 = vmatprep.subr.bf16.mxu0 0
        %567 = vmatpush1.bf16.msra.mxu0 0
        %568 = vmatprep.subr.bf16.mxu0 0
        %569 = vmatpush1.bf16.msra.mxu0 0
        %570 = vmatprep.subr.bf16.mxu0 0
        %571 = vmatpush1.bf16.msra.mxu0 0
        %572 = vmatprep.mubr.bf16.mxu0 0
        %573 = vmatmul.mubr.bf16.gmra.mrb[0].mxu0 %v538
        %v574 = vpop.f32.mrb[0].mxu0
        %v575 = vadd.f32 %v523, %v574
        %v576 = vpop.f32.mrb[0].mxu0
        %v577 = vpop.f32.mrb[0].mxu0
        %v578 = vpop.f32.mrb[0].mxu0
        %579 = vdwg.mxu0
        %v580 = vpack.c.bf16 %v575, %v575
        %v581 = vpack.c.bf16 %v507, %v507
        %v582 = vpack.c.bf16 %v509, %v509
        %583 = vmatprep.subr.bf16.mxu0 0
        %584 = vmatpush1.bf16.xpose.msra.mxu0 %v582
        %585 = vmatprep.subr.bf16.mxu0 0
        %586 = vmatpush1.bf16.xpose.msra.mxu0 0
        %587 = vmatprep.subr.bf16.mxu0 0
        %588 = vmatpush1.bf16.xpose.msra.mxu0 0
        %589 = vmatprep.subr.bf16.mxu0 0
        %590 = vmatpush1.bf16.xpose.msra.mxu0 0
        %591 = vmatprep.subr.bf16.mxu0 0
        %592 = vmatpush1.bf16.xpose.msra.mxu0 0
        %593 = vmatprep.subr.bf16.mxu0 0
        %594 = vmatpush1.bf16.xpose.msra.mxu0 0
        %595 = vmatprep.subr.bf16.mxu0 0
        %596 = vmatpush1.bf16.xpose.msra.mxu0 0
        %597 = vmatprep.subr.bf16.mxu0 0
        %598 = vmatpush1.bf16.xpose.msra.mxu0 0
        %599 = vmatprep.subr.bf16.mxu0 0
        %600 = vmatpush1.bf16.xpose.msra.mxu0 0
        %601 = vmatprep.subr.bf16.mxu0 0
        %602 = vmatpush1.bf16.xpose.msra.mxu0 0
        %603 = vmatprep.subr.bf16.mxu0 0
        %604 = vmatpush1.bf16.xpose.msra.mxu0 0
        %605 = vmatprep.subr.bf16.mxu0 0
        %606 = vmatpush1.bf16.xpose.msra.mxu0 0
        %607 = vmatprep.subr.bf16.mxu0 0
        %608 = vmatpush1.bf16.xpose.msra.mxu0 0
        %609 = vmatprep.subr.bf16.mxu0 0
        %610 = vmatpush1.bf16.xpose.msra.mxu0 0
        %611 = vmatprep.subr.bf16.mxu0 0
        %612 = vmatpush1.bf16.xpose.msra.mxu0 0
        %613 = vmatprep.subr.bf16.mxu0 0
        %614 = vmatpush1.bf16.xpose.msra.mxu0 0
        %615 = vmatprep.mubr.bf16.mxu0 0
        %616 = vmatmul.mubr.bf16.gmra.mrb[0].mxu0 %v581
        %v617 = vpop.f32.mrb[0].mxu0
        %v618 = vadd.f32 0.0, %v617
        %v619 = vpop.f32.mrb[0].mxu0
        %v620 = vpop.f32.mrb[0].mxu0
        %v621 = vpop.f32.mrb[0].mxu0
        %622 = vdwg.mxu0
        %v623 = vmul.f32 %v618, 0.35355338
        %vm624 = vcmask 64512
        %v625 = vsel %vm624, %v623, -inf
        %626 = vmax.xlane.f32.xlu0 %v625
        %v627 = vpop.xlane.xlu0 %626
        %v628 = vsub.f32 %v623, %v627
        %v629 = vmul.f32 %v628, 1.442695
        %v630 = vpow.pop %v629
        %v631 = vsel %vm624, %v630, 0.0
        %632 = vadd.xlane.f32.xlu0 %v631
        %v633 = vpop.xlane.xlu0 %632
        %v634 = vrcp.pop %v633
        %v635 = vmul.f32 %v630, %v634
        %v636 = vpack.c.bf16 %v635, %v635
        %v638 = vsel %vm624, %v636, 0
        %vm640 = vcmask 1043456
        %v642 = vsel %vm640, %v580, 0
        %644 = vmatprep.subr.bf16.mxu0 0
        %645 = vmatpush1.bf16.msra.mxu0 %v642
        %646 = vmatprep.subr.bf16.mxu0 0
        %647 = vmatpush1.bf16.msra.mxu0 0
        %648 = vmatprep.subr.bf16.mxu0 0
        %649 = vmatpush1.bf16.msra.mxu0 0
        %650 = vmatprep.subr.bf16.mxu0 0
        %651 = vmatpush1.bf16.msra.mxu0 0
        %652 = vmatprep.subr.bf16.mxu0 0
        %653 = vmatpush1.bf16.msra.mxu0 0
        %654 = vmatprep.subr.bf16.mxu0 0
        %655 = vmatpush1.bf16.msra.mxu0 0
        %656 = vmatprep.subr.bf16.mxu0 0
        %657 = vmatpush1.bf16.msra.mxu0 0
        %658 = vmatprep.subr.bf16.mxu0 0
        %659 = vmatpush1.bf16.msra.mxu0 0
        %660 = vmatprep.subr.bf16.mxu0 0
        %661 = vmatpush1.bf16.msra.mxu0 0
        %662 = vmatprep.subr.bf16.mxu0 0
        %663 = vmatpush1.bf16.msra.mxu0 0
        %664 = vmatprep.subr.bf16.mxu0 0
        %665 = vmatpush1.bf16.msra.mxu0 0
        %666 = vmatprep.subr.bf16.mxu0 0
        %667 = vmatpush1.bf16.msra.mxu0 0
        %668 = vmatprep.subr.bf16.mxu0 0
        %669 = vmatpush1.bf16.msra.mxu0 0
        %670 = vmatprep.subr.bf16.mxu0 0
        %671 = vmatpush1.bf16.msra.mxu0 0
        %672 = vmatprep.subr.bf16.mxu0 0
        %673 = vmatpush1.bf16.msra.mxu0 0
        %674 = vmatprep.subr.bf16.mxu0 0
        %675 = vmatpush1.bf16.msra.mxu0 0
        %676 = vmatprep.mubr.bf16.mxu0 0
        %677 = vmatmul.mubr.bf16.gmra.mrb[0].mxu0 %v638
        %v678 = vpop.f32.mrb[0].mxu0
        %v679 = vadd.f32 0.0, %v678
        %v680 = vpop.f32.mrb[0].mxu0
        %v681 = vpop.f32.mrb[0].mxu0
        %v682 = vpop.f32.mrb[0].mxu0
        %683 = vdwg.mxu0
        %v684 = vld [vmem:[#allocation2] sm:$0xff]
        %v685 = vpack.c.bf16 %v679, %v679
        %v686 = vld [vmem:[%s420] sm:$0xf]
        %v687 = vld [vmem:[%s420 + $0x4] sm:$0xf]
        %v688 = vld [vmem:[%s420 + $0x8] sm:$0xf]
        %v689 = vld [vmem:[%s420 + $0xc] sm:$0xf]
        %v690 = vld [vmem:[%s420 + $0x10] sm:$0xf]
        %v691 = vld [vmem:[%s420 + $0x14] sm:$0xf]
        %v692 = vld [vmem:[%s420 + $0x18] sm:$0xf]
        %v693 = vld [vmem:[%s420 + $0x1c] sm:$0xf]
        %v694 = vld [vmem:[%s420 + $0x20] sm:$0xf]
        %v695 = vld [vmem:[%s420 + $0x24] sm:$0xf]
        %v696 = vld [vmem:[%s420 + $0x28] sm:$0xf]
        %v697 = vld [vmem:[%s420 + $0x2c] sm:$0xf]
        %v698 = vld [vmem:[%s420 + $0x30] sm:$0xf]
        %v699 = vld [vmem:[%s420 + $0x34] sm:$0xf]
        %v700 = vld [vmem:[%s420 + $0x38] sm:$0xf]
        %v701 = vld [vmem:[%s420 + $0x3c] sm:$0xf]
        %v718 = vunpack.c.l.b16 %v686
        %v719 = vunpack.c.l.b16 %v687
        %v720 = vunpack.c.l.b16 %v688
        %v721 = vunpack.c.l.b16 %v689
        %v722 = vunpack.c.l.b16 %v690
        %v723 = vunpack.c.l.b16 %v691
        %v724 = vunpack.c.l.b16 %v692
        %v725 = vunpack.c.l.b16 %v693
        %v726 = vunpack.c.l.b16 %v694
        %v727 = vunpack.c.l.b16 %v695
        %v728 = vunpack.c.l.b16 %v696
        %v729 = vunpack.c.l.b16 %v697
        %v730 = vunpack.c.l.b16 %v698
        %v731 = vunpack.c.l.b16 %v699
        %v732 = vunpack.c.l.b16 %v700
        %v733 = vunpack.c.l.b16 %v701
        %v734 = vpack.c.b16 %v719, %v718
        %v735 = vpack.c.b16 %v721, %v720
        %v736 = vpack.c.b16 %v723, %v722
        %v737 = vpack.c.b16 %v725, %v724
        %v738 = vpack.c.b16 %v727, %v726
        %v739 = vpack.c.b16 %v729, %v728
        %v740 = vpack.c.b16 %v731, %v730
        %v741 = vpack.c.b16 %v733, %v732
        %750 = vmatprep.subr.bf16.mxu0 0
        %751 = vmatpush1.bf16.msra.mxu0 %v734
        %752 = vmatprep.subr.bf16.mxu0 0
        %753 = vmatpush1.bf16.msra.mxu0 %v735
        %754 = vmatprep.subr.bf16.mxu0 0
        %755 = vmatpush1.bf16.msra.mxu0 %v736
        %756 = vmatprep.subr.bf16.mxu0 0
        %757 = vmatpush1.bf16.msra.mxu0 %v737
        %758 = vmatprep.subr.bf16.mxu0 0
        %759 = vmatpush1.bf16.msra.mxu0 %v738
        %760 = vmatprep.subr.bf16.mxu0 0
        %761 = vmatpush1.bf16.msra.mxu0 %v739
        %762 = vmatprep.subr.bf16.mxu0 0
        %763 = vmatpush1.bf16.msra.mxu0 %v740
        %764 = vmatprep.subr.bf16.mxu0 0
        %765 = vmatpush1.bf16.msra.mxu0 %v741
        %766 = vmatprep.subr.bf16.mxu0 0
        %767 = vmatpush1.bf16.msra.mxu0 0
        %768 = vmatprep.subr.bf16.mxu0 0
        %769 = vmatpush1.bf16.msra.mxu0 0
        %770 = vmatprep.subr.bf16.mxu0 0
        %771 = vmatpush1.bf16.msra.mxu0 0
        %772 = vmatprep.subr.bf16.mxu0 0
        %773 = vmatpush1.bf16.msra.mxu0 0
        %774 = vmatprep.subr.bf16.mxu0 0
        %775 = vmatpush1.bf16.msra.mxu0 0
        %776 = vmatprep.subr.bf16.mxu0 0
        %777 = vmatpush1.bf16.msra.mxu0 0
        %778 = vmatprep.subr.bf16.mxu0 0
        %779 = vmatpush1.bf16.msra.mxu0 0
        %780 = vmatprep.subr.bf16.mxu0 0
        %781 = vmatpush1.bf16.msra.mxu0 0
        %782 = vmatprep.mubr.bf16.mxu0 0
        %783 = vmatmul.mubr.bf16.gmra.mrb[0].mxu0 %v685
        %v784 = vpop.f32.mrb[0].mxu0
        %v785 = vadd.f32 0.0, %v784
        %v786 = vpop.f32.mrb[0].mxu0
        %v787 = vpop.f32.mrb[0].mxu0
        %v788 = vpop.f32.mrb[0].mxu0
        %789 = vdwg.mxu0
        %v790 = vadd.f32 %v684, %v785
        %791 = vst.msk [vmem:[#allocation2] sm:$0xff] %vm468, %v790
        %p792 = scmp.eq.s32.totalorder %s27, 3
        // Predicated region
        $region57: #{tpu_custom_call.1} parent=51 // pred_check
          %p793 = pneg %p792
        $region58: #{tpu_custom_call.1} parent=51 // pred_check_branch
          %795 = sbr.rel (%p793) target = $region60
        $region59: #{tpu_custom_call.1} parent=51 // pred_region
          %v796 = vld [vmem:[#allocation2] sm:$0xff]
          %v797 = vld [vmem:[%s7] sm:$0x1]
          %v799 = vlaneseq
          %v800 = vshrl.u32 %v799, 7
          %v801 = vsub.s32 0, %v800
          %v802 = vrot.slane %v797, %v801
          %v804 = vadd.f32 %v796, %v802
          %v805 = vpack.c.bf16 %v804, %v804
          %vm806 = vcmask 257024
          %807 = vst.msk [vmem:[%s390] sm:$0xf] %vm806, %v805
        $region60: #{tpu_custom_call.1} parent=51 // pred_fallthru
          _
        %s808 = sand.u32 %s245, 1
        %s809 = scalar_lea.sflag [#allocation4], %s808
        %s810 = sand.u32 %s245, 1
        %s811 = smul.addr %s810, 4
        %s812 = scalar_lea.vmem [#allocation3], %s811
        // Predicated region
        $region61: #{tpu_custom_call.1} parent=51 // pred_check
          %p813 = pneg %p255
        $region62: #{tpu_custom_call.1} parent=51 // pred_check_branch
          %815 = sbr.rel (%p813) target = $region64
        $region63: #{tpu_custom_call.1} parent=51 // pred_region
          %s817 = ssub.s32 64, 64
          %818 = vsyncadd %s809, %s817
          %s819 = smul.addr %s26, 64
          %s820 = scalar_lea.hbm %s8, %s819
          %s822 = sshll.u32 %s812, 4
          %s823 = int_to_ptr.vmem [resolvable:$true] %s822
          %825 = dma.vmem_to_hbm [thread:$0]  %s823, 64, %s820, %s809
        $region64: #{tpu_custom_call.1} parent=51 // pred_fallthru
          _
      $region52: #{tpu_custom_call.1} parent=5 // pred_fallthru
        _
      %p826 = scmp.le.s32.totalorder 2, %s17
      // Predicated region
      $region65: #{tpu_custom_call.1} parent=5 // pred_check
        %p827 = pneg %p826
      $region66: #{tpu_custom_call.1} parent=5 // pred_check_branch
        %829 = sbr.rel (%p827) target = $region68
      $region67: #{tpu_custom_call.1} parent=5 // pred_region
        %s830 = ssub.s32 %s17, 2
        // Predicated region
        $region69: #{tpu_custom_call.1} parent=67 // pred_check
          %p831 = pneg %p261
        $region70: #{tpu_custom_call.1} parent=67 // pred_check_branch
          %833 = sbr.rel (%p831) target = $region72
        $region71: #{tpu_custom_call.1} parent=67 // pred_region
          %s834 = sand.u32 %s246, 1
          %s835 = scalar_lea.sflag [#allocation4], %s834
          %s836 = sand.u32 %s246, 1
          %s837 = smul.addr %s836, 4
          %s838 = scalar_lea.vmem [#allocation3], %s837
          %839 = dma.done %s835, 64
        $region72: #{tpu_custom_call.1} parent=67 // pred_fallthru
          _
      $region68: #{tpu_custom_call.1} parent=5 // pred_fallthru
        _
    $region6: #{tpu_custom_call.1} parent=1 // loop_footer
      %s21 = sadd.s32 1, %s17
    $region7: #{tpu_custom_call.1} parent=1 // loop_footer_branch
      %16 = sbr.rel target = $region3
    $region8: #{tpu_custom_call.1} parent=1 // loop_exit
      _
    %840 = vsyncpa [#allocation4], 1
    %s841 = scalar_lea.sflag [#allocation4], 1
    %842 = vsyncpa %s841, 1

</llo_original>
